<compile_context>
chip_gen: v6e
topology: v6e:2x2x1
jax: 0.10.0
libtpu: 0.0.40
codegen_flags: <defaults>
</compile_context>

<pallas_src>
import functools

import jax
import jax.numpy as jnp
from jax.experimental import pallas as pl
from jax.experimental.pallas import tpu as pltpu


_LANES = 128          # vreg lane width
_ACC_SUBLANES = 8     # f32 accumulator slab: one vreg (8, 128)


def _round_up(x: int, m: int) -> int:
    return ((x + m - 1) // m) * m


def _min_sublane_tile(dtype) -> int:
    """Native sublane tile for a dtype: 8 for 32-bit, 16 for bf16, 32 for 8-bit."""
    itemsize = jnp.dtype(dtype).itemsize
    if itemsize >= 4:
        return 8
    if itemsize == 2:
        return 16
    return 32


# ---------------------------------------------------------------------------
# Pallas kernel: per-chunk partial sum of squared differences.
#   grid = (num_chunks, steps_per_chunk)
#     axis 0: "parallel"   (megacore sharding on v7x; no-op on v5e/v6e)
#     axis 1: "arbitrary"  (sequential reduction; VMEM accumulator)
# Each step reduces a (tile_rows, 128) block down to an (8, 128) vreg slab
# with VPU-only adds; the slab is written out once per chunk.
# ---------------------------------------------------------------------------
def _mse_partial_kernel(pred_ref, target_ref, out_ref, acc_ref, *, tile_rows):
    k = pl.program_id(1)

    @pl.when(k == 0)
    def _():
        acc_ref[...] = jnp.zeros_like(acc_ref)

    d = pred_ref[...].astype(jnp.float32) - target_ref[...].astype(jnp.float32)
    sq = d * d
    # (tile_rows, 128) -> (tile_rows/8, 8, 128) -> sum over leading axis:
    # pure elementwise vreg adds on the VPU (no per-step cross-lane reduce).
    acc_ref[...] += jnp.sum(
        sq.reshape(tile_rows // _ACC_SUBLANES, _ACC_SUBLANES, _LANES), axis=0
    )

    @pl.when(k == pl.num_programs(1) - 1)
    def _():
        out_ref[...] = acc_ref[...]


def mse_loss_mean(pred: jax.Array, target: jax.Array,
                  row_tile: int = 2048,
                  max_parallel_chunks: int = 8) -> jax.Array:
    """Pallas equivalent of torch.nn.MSELoss(reduction='mean')."""
    assert pred.shape == target.shape, "MSE requires matching shapes"
    n_elem = pred.size
    if n_elem == 0:
        return jnp.float32(0.0)

    sublane = max(_min_sublane_tile(pred.dtype), _min_sublane_tile(target.dtype))
    rows_raw = pl.cdiv(n_elem, _LANES)

    # Tile: as large as the data allows, capped by row_tile, aligned to the
    # dtype-native sublane tile (keeps loads unmasked for bf16 / int8 inputs).
    tile_rows = min(_round_up(row_tile, sublane), _round_up(rows_raw, sublane))
    rows = _round_up(rows_raw, tile_rows)
    padded = rows * _LANES

    def _prep(x):
        flat = x.reshape(-1)
        if padded != n_elem:
            # Zero padding on BOTH operands: diff = 0 → contributes nothing.
            flat = jnp.pad(flat, (0, padded - n_elem))
        return flat.reshape(rows, _LANES)

    pred2d = _prep(pred)
    target2d = _prep(target)

    total_steps = rows // tile_rows
    num_chunks = min(max_parallel_chunks, total_steps)
    while total_steps % num_chunks != 0:
        num_chunks -= 1
    steps_per_chunk = total_steps // num_chunks

    kernel = functools.partial(_mse_partial_kernel, tile_rows=tile_rows)

    in_spec = pl.BlockSpec(
        (tile_rows, _LANES),
        lambda c, k: (c * steps_per_chunk + k, 0),
    )

    itemsize_p = jnp.dtype(pred.dtype).itemsize
    itemsize_t = jnp.dtype(target.dtype).itemsize
    cost = pl.CostEstimate(
        flops=3 * n_elem,                    # sub, mul, add per element
        transcendentals=0,
        bytes_accessed=n_elem * (itemsize_p + itemsize_t)
        + num_chunks * _ACC_SUBLANES * _LANES * 4,
    )

    # VMEM budget: 2 inputs x 2 pipeline buffers x tile + scratch/output + slack.
    # Stays comfortably below v7x's 64 MiB physical VMEM.
    tile_bytes = tile_rows * _LANES * max(itemsize_p, itemsize_t)
    vmem_needed = 2 * 2 * tile_bytes + 4 * _ACC_SUBLANES * _LANES * 4 + (2 << 20)
    vmem_limit = min(max(vmem_needed, 16 << 20), 48 << 20)

    partial = pl.pallas_call(
        kernel,
        out_shape=jax.ShapeDtypeStruct(
            (num_chunks * _ACC_SUBLANES, _LANES), jnp.float32),
        grid_spec=pltpu.PrefetchScalarGridSpec(
            num_scalar_prefetch=0,
            grid=(num_chunks, steps_per_chunk),
            in_specs=[in_spec, in_spec],
            out_specs=pl.BlockSpec((_ACC_SUBLANES, _LANES), lambda c, k: (c, 0)),
            scratch_shapes=[pltpu.VMEM((_ACC_SUBLANES, _LANES), jnp.float32)],
        ),
        compiler_params=pltpu.CompilerParams(
            dimension_semantics=("parallel", "arbitrary"),
            vmem_limit_bytes=vmem_limit,
        ),
        cost_estimate=cost,
    )(pred2d, target2d)

    # Single tiny cross-lane reduction over the (num_chunks*8, 128) slab.
    return jnp.sum(partial) * jnp.float32(1.0 / float(n_elem))


# ---------------------------------------------------------------------------
# JAX mirror of the PyTorch BaseNetwork class structure.
# ---------------------------------------------------------------------------
class BaseNetwork:
    """JAX/Pallas mirror of network.core.BaseNetwork (abstract INR base)."""

    def __call__(self, x):
        return self.forward(x)

    def forward(self, x):
        # TODO(synk): forward is abstract in the PyTorch module (raises
        # NotImplementedError); concrete INR subclasses define the network.
        raise NotImplementedError

    def _loss(self, output_batch, target_batch):
        """The concrete compute of _training_step: MSE mean loss (Pallas)."""
        return mse_loss_mean(output_batch, target_batch)

    # fit / generate / _training_step involve autograd, optimizers and
    # DataLoaders (host-side orchestration) — not kernel material.


# ---------------------------------------------------------------------------
# Demo / self-test
# ---------------------------------------------------------------------------
if __name__ == "__main__":
    key = jax.random.PRNGKey(0)
    k_pred, k_tgt, k_pred2, k_tgt2 = jax.random.split(key, 4)

    net = BaseNetwork()

    # NCHW like a PyTorch conv-model output: batch=2, channels=4, 16x16 spatial.
    shape = (2, 4, 16, 16)
    pred = jax.random.normal(k_pred, shape, dtype=jnp.float32)
    target = jax.random.normal(k_tgt, shape, dtype=jnp.float32)

    loss = jax.block_until_ready(net._loss(pred, target))
    ref = jnp.mean((pred - target) ** 2)
    assert jnp.allclose(loss, ref, rtol=1e-5, atol=1e-6), (loss, ref)

    # A non-128-divisible shape to exercise the zero-padded path.
    shape2 = (2, 4, 17, 15)
    pred2 = jax.random.normal(k_pred2, shape2, dtype=jnp.float32)
    target2 = jax.random.normal(k_tgt2, shape2, dtype=jnp.float32)

    loss2 = jax.block_until_ready(net._loss(pred2, target2))
    ref2 = jnp.mean((pred2 - target2) ** 2)
    assert jnp.allclose(loss2, ref2, rtol=1e-5, atol=1e-6), (loss2, ref2)

    print("KERNEL_OK")
</pallas_src>

<mosaic_0001>
module attributes {stable_mosaic.version = 11 : i64} {
  func.func @_mse_partial_kernel(%arg0: i32, %arg1: i32, %arg2: memref<16x128xf32, #tpu.memory_space<vmem>>, %arg3: memref<16x128xf32, #tpu.memory_space<vmem>>, %arg4: memref<8x128xf32, #tpu.memory_space<vmem>>, %arg5: memref<8x128xf32, #tpu.memory_space<vmem>>) attributes {dimension_semantics = [#tpu.dimension_semantics<parallel>, #tpu.dimension_semantics<arbitrary>], iteration_bounds = array<i64: 1, 1>, scalar_prefetch = 0 : i64, scratch_operands = 1 : i64, tpu.core_type = #tpu.core_type<tc>, window_params = [{transform_indices = @transform_0, window_bounds = array<i64: 16, 128>}, {transform_indices = @transform_1, window_bounds = array<i64: 16, 128>}, {transform_indices = @transform_2, window_bounds = array<i64: 8, 128>}]} {
    %c0_i32 = arith.constant 0 : i32
    %0 = arith.cmpi eq, %arg1, %c0_i32 : i32
    %1 = arith.extui %0 : i1 to i32
    %c0_i32_0 = arith.constant 0 : i32
    %2 = arith.cmpi ne, %1, %c0_i32_0 : i32
    scf.if %2 {
      %cst_10 = arith.constant 0.000000e+00 : f32
      %15 = vector.broadcast %cst_10 : f32 to vector<8x128xf32>
      %c0_11 = arith.constant 0 : index
      %c0_12 = arith.constant 0 : index
      %16 = vector.load %arg5[%c0_11, %c0_12] : memref<8x128xf32, #tpu.memory_space<vmem>>, vector<8x128xf32>
      tpu.vector_store %arg5[%c0_11, %c0_12], %15 {strides = array<i32>} : memref<8x128xf32, #tpu.memory_space<vmem>>, vector<8x128xf32>,
    } else {
    }
    %c0 = arith.constant 0 : index
    %c0_1 = arith.constant 0 : index
    %3 = vector.load %arg2[%c0, %c0_1] : memref<16x128xf32, #tpu.memory_space<vmem>>, vector<16x128xf32>
    %c0_2 = arith.constant 0 : index
    %c0_3 = arith.constant 0 : index
    %4 = vector.load %arg3[%c0_2, %c0_3] : memref<16x128xf32, #tpu.memory_space<vmem>>, vector<16x128xf32>
    %5 = arith.subf %3, %4 : vector<16x128xf32>
    %6 = arith.mulf %5, %5 : vector<16x128xf32>
    %c0_4 = arith.constant 0 : index
    %c0_5 = arith.constant 0 : index
    %7 = vector.load %arg5[%c0_4, %c0_5] : memref<8x128xf32, #tpu.memory_space<vmem>>, vector<8x128xf32>
    %8 = vector.shape_cast %6 : vector<16x128xf32> to vector<2x8x128xf32>
    %cst = arith.constant dense<0.000000e+00> : vector<8x128xf32>
    %9 = vector.multi_reduction <add>, %8, %cst [0] : vector<2x8x128xf32> to vector<8x128xf32>
    %10 = arith.addf %7, %9 : vector<8x128xf32>
    %c0_6 = arith.constant 0 : index
    %c0_7 = arith.constant 0 : index
    %11 = vector.load %arg5[%c0_6, %c0_7] : memref<8x128xf32, #tpu.memory_space<vmem>>, vector<8x128xf32>
    tpu.vector_store %arg5[%c0_6, %c0_7], %10 {strides = array<i32>} : memref<8x128xf32, #tpu.memory_space<vmem>>, vector<8x128xf32>,
    %c0_i32_8 = arith.constant 0 : i32
    %12 = arith.cmpi eq, %arg1, %c0_i32_8 : i32
    %13 = arith.extui %12 : i1 to i32
    %c0_i32_9 = arith.constant 0 : i32
    %14 = arith.cmpi ne, %13, %c0_i32_9 : i32
    scf.if %14 {
      %c0_10 = arith.constant 0 : index
      %c0_11 = arith.constant 0 : index
      %15 = vector.load %arg5[%c0_10, %c0_11] : memref<8x128xf32, #tpu.memory_space<vmem>>, vector<8x128xf32>
      %c0_12 = arith.constant 0 : index
      %c0_13 = arith.constant 0 : index
      %16 = vector.load %arg4[%c0_12, %c0_13] : memref<8x128xf32, #tpu.memory_space<vmem>>, vector<8x128xf32>
      tpu.vector_store %arg4[%c0_12, %c0_13], %15 {strides = array<i32>} : memref<8x128xf32, #tpu.memory_space<vmem>>, vector<8x128xf32>,
    } else {
    }
    return
  }
  func.func @transform_0(%arg0: i32, %arg1: i32) -> (i32, i32) {
    %c1_i32 = arith.constant 1 : i32
    %0 = arith.muli %arg0, %c1_i32 : i32
    %1 = arith.addi %0, %arg1 : i32
    %c0_i32 = arith.constant 0 : i32
    %c0_i32_0 = arith.constant 0 : i32
    return %1, %c0_i32 : i32, i32
  }
  func.func @transform_1(%arg0: i32, %arg1: i32) -> (i32, i32) {
    %c1_i32 = arith.constant 1 : i32
    %0 = arith.muli %arg0, %c1_i32 : i32
    %1 = arith.addi %0, %arg1 : i32
    %c0_i32 = arith.constant 0 : i32
    %c0_i32_0 = arith.constant 0 : i32
    return %1, %c0_i32 : i32, i32
  }
  func.func @transform_2(%arg0: i32, %arg1: i32) -> (i32, i32) {
    %c0_i32 = arith.constant 0 : i32
    %c0_i32_0 = arith.constant 0 : i32
    return %arg0, %c0_i32 : i32, i32
  }
}

</mosaic_0001>

<llo_original>
// kernel: tpu_custom_call.1
$region0: #{tpu_custom_call.1}
  #allocation0 [shape = 'u32[]', space=smem, size = 0x4, offset = 0x4, fixed_abs, tag = 'smem constant byte address 0x4 - core index']
  #allocation1 [shape = 'u32[144,128]{1,0:T(1,128)}', space=vmem, size = 0x12000, scoped, tag = 'internal scratch']
  #allocation2 [shape = 'f32[8,128]{1,0:T(8,128)}', space=vmem, size = 0x1000, scoped, tag = 'scratch operand']
  %s0 = inlined_call_operand.hbm [shape: f32[16,128], index: 0, kind: input, shape index: {}]
  %s1 = inlined_call_operand.hbm [shape: f32[16,128], index: 1, kind: input, shape index: {}]
  %s2 = inlined_call_operand.hbm [shape: f32[8,128], index: 2, kind: output, shape index: {}]
  %s3 = sld [smem:[#allocation0]]
  $region34: #{tpu_custom_call.1} parent=0
    _
  %s5 = ssub.s32 1, %s3
  %s6 = scalar_select 0, %s5, %s3
  $region1: #{tpu_custom_call.1} parent=0
    #allocation3 [shape = 'u8[8192]{0}', space=vmem, size = 0x2000, scoped, tag = 'input window, operand 0, single buffered']
    #allocation4 [shape = 's32[1]{0}', space=sflag, size = 0x4, scoped, tag = 'scoped memory for tpu_custom_call.1']
    #allocation5 [shape = 's32[1]{0}', space=sflag, size = 0x4, scoped, tag = 'scoped memory for tpu_custom_call.1']
    #allocation6 [shape = 'u8[8192]{0}', space=vmem, size = 0x2000, scoped, tag = 'input window, operand 1, single buffered']
    #allocation7 [shape = 's32[1]{0}', space=sflag, size = 0x4, scoped, tag = 'scoped memory for tpu_custom_call.1']
    #allocation8 [shape = 'u8[4096]{0}', space=vmem, size = 0x1000, scoped, tag = 'output window, operand 0, single buffered']
    %7 = vsyncpa [#allocation4], 0
    %8 = vsyncpa [#allocation7], 0
    %9 = vsyncpa [#allocation5], 0
    // Predicated region
    $region2: #{tpu_custom_call.1} parent=1 // pred_check
      _
    $region3: #{tpu_custom_call.1} parent=1 // pred_check_branch
      %11 = sbr.rel (0) target = $region5
    $region4: #{tpu_custom_call.1} parent=1 // pred_region
      %s12 = sadd.s32 0, 0
      %s13 = smul.u32 2, %s12
      %s15 = ssub.s32 256, 256
      %16 = vsyncadd [#allocation4], %s15
      %s17 = smul.addr %s13, 128
      %s18 = scalar_lea.hbm %s0, %s17
      %s19 = sshll.u32 [#allocation3], 4
      %s20 = int_to_ptr.vmem [resolvable:$true] %s19
      %25 = dma.hbm_to_vmem [thread:$0]  %s18, 256, %s20, [#allocation4], 128, 128, 8
    $region5: #{tpu_custom_call.1} parent=1 // pred_fallthru
      _
    // Predicated region
    $region6: #{tpu_custom_call.1} parent=1 // pred_check
      _
    $region7: #{tpu_custom_call.1} parent=1 // pred_check_branch
      %27 = sbr.rel (0) target = $region9
    $region8: #{tpu_custom_call.1} parent=1 // pred_region
      %s28 = sadd.s32 0, 0
      %s29 = smul.u32 2, %s28
      %s31 = ssub.s32 256, 256
      %32 = vsyncadd [#allocation7], %s31
      %s33 = smul.addr %s29, 128
      %s34 = scalar_lea.hbm %s1, %s33
      %s35 = sshll.u32 [#allocation6], 4
      %s36 = int_to_ptr.vmem [resolvable:$true] %s35
      %41 = dma.hbm_to_vmem [thread:$0]  %s34, 256, %s36, [#allocation7], 128, 128, 8
    $region9: #{tpu_custom_call.1} parent=1 // pred_fallthru
      _
    // Predicated region
    $region10: #{tpu_custom_call.1} parent=1 // pred_check
      _
    $region11: #{tpu_custom_call.1} parent=1 // pred_check_branch
      %43 = sbr.rel (0) target = $region13
    $region12: #{tpu_custom_call.1} parent=1 // pred_region
      %44 = dma.done [#allocation4], 256
    $region13: #{tpu_custom_call.1} parent=1 // pred_fallthru
      _
    // Predicated region
    $region14: #{tpu_custom_call.1} parent=1 // pred_check
      _
    $region15: #{tpu_custom_call.1} parent=1 // pred_check_branch
      %46 = sbr.rel (0) target = $region17
    $region16: #{tpu_custom_call.1} parent=1 // pred_region
      %47 = dma.done [#allocation7], 256
    $region17: #{tpu_custom_call.1} parent=1 // pred_fallthru
      _
    %s48 = sadd.s32 0, 0
    %s49 = smul.u32 2, %s48
    %s50 = sadd.s32 0, 0
    %s51 = smul.u32 2, %s50
    %p52 = scmp.eq.s32.totalorder 0, 0
    // Predicated region
    $region18: #{tpu_custom_call.1} parent=1 // pred_check
      %p53 = pneg %p52
    $region19: #{tpu_custom_call.1} parent=1 // pred_check_branch
      %55 = sbr.rel (%p53) target = $region21
    $region20: #{tpu_custom_call.1} parent=1 // pred_region
      %56 = vst [vmem:[#allocation2] sm:$0xff] 0.0
    $region21: #{tpu_custom_call.1} parent=1 // pred_fallthru
      _
    %v57 = vld [vmem:[#allocation3] sm:$0xff]
    %v58 = vld [vmem:[#allocation3 + $0x8] sm:$0xff]
    %v59 = vld [vmem:[#allocation6] sm:$0xff]
    %v60 = vld [vmem:[#allocation6 + $0x8] sm:$0xff]
    %v61 = vsub.f32 %v57, %v59
    %v62 = vsub.f32 %v58, %v60
    %v63 = vmul.f32 %v61, %v61
    %v64 = vmul.f32 %v62, %v62
    %v65 = vld [vmem:[#allocation2] sm:$0xff]
    %v66 = vadd.f32 %v63, %v64
    %v67 = vadd.f32 %v65, %v66
    %68 = vst [vmem:[#allocation2] sm:$0xff] %v67
    // Predicated region
    $region22: #{tpu_custom_call.1} parent=1 // pred_check
      %p69 = pneg %p52
    $region23: #{tpu_custom_call.1} parent=1 // pred_check_branch
      %71 = sbr.rel (%p69) target = $region25
    $region24: #{tpu_custom_call.1} parent=1 // pred_region
      %v72 = vld [vmem:[#allocation2] sm:$0xff]
      %73 = vst [vmem:[#allocation8] sm:$0xff] %v72
    $region25: #{tpu_custom_call.1} parent=1 // pred_fallthru
      _
    // Predicated region
    $region26: #{tpu_custom_call.1} parent=1 // pred_check
      _
    $region27: #{tpu_custom_call.1} parent=1 // pred_check_branch
      %75 = sbr.rel (0) target = $region29
    $region28: #{tpu_custom_call.1} parent=1 // pred_region
      %s77 = ssub.s32 128, 128
      %78 = vsyncadd [#allocation5], %s77
      %s80 = sshll.u32 [#allocation8], 4
      %s81 = int_to_ptr.vmem [resolvable:$true] %s80
      %83 = dma.vmem_to_hbm [thread:$0]  %s81, 128, %s2, [#allocation5]
    $region29: #{tpu_custom_call.1} parent=1 // pred_fallthru
      _
    // Predicated region
    $region30: #{tpu_custom_call.1} parent=1 // pred_check
      _
    $region31: #{tpu_custom_call.1} parent=1 // pred_check_branch
      %85 = sbr.rel (0) target = $region33
    $region32: #{tpu_custom_call.1} parent=1 // pred_region
      %86 = dma.done [#allocation5], 128
    $region33: #{tpu_custom_call.1} parent=1 // pred_fallthru
      _
    %87 = vsyncpa [#allocation4], 1
    %88 = vsyncpa [#allocation7], 1
    %89 = vsyncpa [#allocation5], 1

</llo_original>
